<compile_context>
chip_gen: v7x
topology: tpu7x:2x2x1
jax: 0.10.0
libtpu: 0.0.40
codegen_flags: <defaults>
</compile_context>

<pallas_src>
import jax
import jax.numpy as jnp
from jax.experimental import pallas as pl
from jax.experimental.pallas import tpu as pltpu


# ----------------------------- Pallas kernels -------------------------------

def _make_matmul_kernel(k_axis, single_k, fuse_norm):
    """Builds the kernel body.

    Refs seen by the kernel (leading grid dims squeezed away by the BlockSpecs):
      t_ref : (tm, tk)  Toeplitz tile (compute dtype)
      x_ref : (tk, tn)  rhs tile (compute dtype; tn is the lane dim)
      s_ref : (tm, 1)   optional per-row 1/denorm (f32), broadcast over lanes
      o_ref : (tm, tn)  output tile
      acc   : (tm, tn)  f32 accumulator scratch (only when multiple K steps)
    """
    if single_k:
        if fuse_norm:
            def kernel(t_ref, x_ref, s_ref, o_ref):
                acc = jnp.dot(t_ref[...], x_ref[...],
                              preferred_element_type=jnp.float32)
                o_ref[...] = (acc * s_ref[...]).astype(o_ref.dtype)
        else:
            def kernel(t_ref, x_ref, o_ref):
                o_ref[...] = jnp.dot(
                    t_ref[...], x_ref[...],
                    preferred_element_type=jnp.float32).astype(o_ref.dtype)
    else:
        if fuse_norm:
            def kernel(t_ref, x_ref, s_ref, o_ref, acc_ref):
                @pl.when(pl.program_id(k_axis) == 0)
                def _():
                    acc_ref[...] = jnp.zeros_like(acc_ref)

                acc_ref[...] += jnp.dot(t_ref[...], x_ref[...],
                                        preferred_element_type=jnp.float32)

                @pl.when(pl.program_id(k_axis) == pl.num_programs(k_axis) - 1)
                def _():
                    o_ref[...] = (acc_ref[...] * s_ref[...]).astype(o_ref.dtype)
        else:
            def kernel(t_ref, x_ref, o_ref, acc_ref):
                @pl.when(pl.program_id(k_axis) == 0)
                def _():
                    acc_ref[...] = jnp.zeros_like(acc_ref)

                acc_ref[...] += jnp.dot(t_ref[...], x_ref[...],
                                        preferred_element_type=jnp.float32)

                @pl.when(pl.program_id(k_axis) == pl.num_programs(k_axis) - 1)
                def _():
                    o_ref[...] = acc_ref[...].astype(o_ref.dtype)
    return kernel


# ------------------------------ helpers --------------------------------------

def _pick_tile(dim, preferred, align):
    """Largest tile <= preferred that divides dim and is a multiple of align,
    otherwise the full dim (full-extent blocks are always legal)."""
    if dim <= preferred:
        return dim
    t = (preferred // align) * align
    while t >= align:
        if dim % t == 0:
            return t
        t -= align
    return dim


def _vmem_budget_bytes():
    """Generation-aware scoped-VMEM cap: ~3/4 of physical capacity
    (v5e/v6e: 128 MiB physical -> ~96 MiB; v7x: 64 MiB -> ~48 MiB)."""
    cap = 64 * 1024 * 1024  # conservative fallback = v7x physical size
    try:
        info_cap = pltpu.get_tpu_info().vmem_capacity_bytes
        if info_cap:
            cap = int(info_cap)
    except Exception:
        pass
    return (3 * cap) // 4


def toeplitz_apply(T, x, inv_scale=None, *, compute_dtype=jnp.bfloat16):
    """out[b,h] = scale[h] * (T[h] @ x[b,h]).

    T         : (H, N, N), cast to compute_dtype for the MXU
    x         : (B, H, N, D)
    inv_scale : optional (H, N, 1) f32 per-row scale (fused normalization)
    """
    B, H, N, D = x.shape
    assert T.shape == (H, N, N)
    out_dtype = x.dtype
    fuse_norm = inv_scale is not None

    T_c = T.astype(compute_dtype)

    # Tile sizes:
    #   tm: sublane dim of T / out  -> 16-aligned (bf16 packs [16,128] per vreg)
    #   tk: lane dim of T, sublane of x -> 128-aligned or full extent
    #   tn: lane dim of x / out     -> 128-aligned or full extent
    tm = _pick_tile(N, 512, 16)
    tk = _pick_tile(N, 512, 128)
    single_k = (tk == N)
    k_steps = N // tk

    # Layout selection (avoid a full HBM transpose round-trip when possible):
    #   B == 1          : pure reshape to (H, N, D)
    #   B > 1, D >= 256 : keep (B, H, N, D); batch becomes a parallel grid axis
    #   otherwise       : fold batch into the lane dim -> (H, N, B*D)
    batched = (B > 1) and (D >= 256)
    if B == 1:
        x_l = x.reshape(H, N, D).astype(compute_dtype)
        lanes = D
    elif batched:
        x_l = x.astype(compute_dtype)
        lanes = D
    else:
        x_l = jnp.transpose(x, (1, 2, 0, 3)).reshape(H, N, B * D)
        x_l = x_l.astype(compute_dtype)
        lanes = B * D
    tn = _pick_tile(lanes, 1024, 128)

    if batched:
        # NOTE(v7x megacore): leading parallel axes (B, H) get sharded across
        # the 2 TensorCores; B*H*(N//tm)*(lanes//tn) should ideally be even.
        grid = (B, H, N // tm, lanes // tn, k_steps)
        k_axis = 4
        t_spec = pl.BlockSpec((None, tm, tk), lambda b, h, i, j, k: (h, i, k))
        x_spec = pl.BlockSpec((None, None, tk, tn),
                              lambda b, h, i, j, k: (b, h, k, j))
        s_spec = pl.BlockSpec((None, tm, 1), lambda b, h, i, j, k: (h, i, 0))
        o_spec = pl.BlockSpec((None, None, tm, tn),
                              lambda b, h, i, j, k: (b, h, i, j))
        out_shape = jax.ShapeDtypeStruct((B, H, N, D), out_dtype)
    else:
        grid = (H, N // tm, lanes // tn, k_steps)
        k_axis = 3
        t_spec = pl.BlockSpec((None, tm, tk), lambda h, i, j, k: (h, i, k))
        x_spec = pl.BlockSpec((None, tk, tn), lambda h, i, j, k: (h, k, j))
        s_spec = pl.BlockSpec((None, tm, 1), lambda h, i, j, k: (h, i, 0))
        o_spec = pl.BlockSpec((None, tm, tn), lambda h, i, j, k: (h, i, j))
        out_shape = jax.ShapeDtypeStruct((H, N, lanes), out_dtype)

    in_specs = [t_spec, x_spec]
    inputs = [T_c, x_l]
    if fuse_norm:
        in_specs.append(s_spec)
        inputs.append(inv_scale.astype(jnp.float32))

    scratch_shapes = [] if single_k else [pltpu.VMEM((tm, tn), jnp.float32)]

    dsize = jnp.dtype(compute_dtype).itemsize
    osize = jnp.dtype(out_dtype).itemsize
    vmem_need = (2 * (tm * tk + tk * tn) * dsize            # double-buffered inputs
                 + 2 * tm * tn * osize                      # double-buffered output
                 + (0 if single_k else tm * tn * 4)         # f32 accumulator
                 + (2 * tm * 4 if fuse_norm else 0))        # row-scale tiles
    vmem_limit = int(min(max(2 * vmem_need, 32 * 1024 * 1024),
                         _vmem_budget_bytes()))

    cost = pl.CostEstimate(
        flops=2 * B * H * N * N * D,
        transcendentals=0,
        bytes_accessed=int(T_c.size * dsize + x_l.size * dsize
                           + B * H * N * D * osize),
    )

    kernel = _make_matmul_kernel(k_axis, single_k, fuse_norm)

    out_l = pl.pallas_call(
        kernel,
        out_shape=out_shape,
        grid_spec=pltpu.PrefetchScalarGridSpec(
            num_scalar_prefetch=0,
            grid=grid,
            in_specs=in_specs,
            out_specs=o_spec,
            scratch_shapes=scratch_shapes,
        ),
        compiler_params=pltpu.CompilerParams(
            dimension_semantics=("parallel",) * (len(grid) - 1) + ("arbitrary",),
            vmem_limit_bytes=vmem_limit,
        ),
        cost_estimate=cost,
    )(*inputs)

    if batched:
        return out_l
    if B == 1:
        return out_l.reshape(B, H, N, D)
    return jnp.transpose(out_l.reshape(H, N, B, D), (2, 0, 1, 3))


# --------------------------- Module re-implementation ------------------------

class ToeplitzMultiheadPallas:
    def __init__(self, h, n, causal=False, use_exp=False, use_decay=False,
                 compute_dtype=jnp.bfloat16, key=None):
        if key is None:
            key = jax.random.PRNGKey(0)
        self.h = h
        self.n = n
        self.causal = causal
        self.use_exp = use_exp
        self.use_decay = use_decay
        self.compute_dtype = compute_dtype
        self.zero_value = float("-inf") if use_exp else 0.0

        k_pos, k_zero, k_neg = jax.random.split(key, 3)
        # torch.rand -> U[0, 1)
        self.pos = jax.random.uniform(k_pos, (h, n - 1), dtype=jnp.float32)
        self.zero = jax.random.uniform(k_zero, (h, 1), dtype=jnp.float32)
        if causal:
            self.neg = jnp.full((h, n - 1), self.zero_value, dtype=jnp.float32)
        else:
            self.neg = jax.random.uniform(k_neg, (h, n - 1), dtype=jnp.float32)
        if use_decay:
            self.gamma = jnp.ones((1,), dtype=jnp.float32) * 10.0

    # --- glue: build the length-2n kernel `a`, exactly as the torch forward ---
    def _build_a(self, n):
        dtype = jnp.float32
        l1 = min(n - 1, self.n - 1)
        l2 = max(0, n - 1 - l1)
        pos = jnp.concatenate(
            [self.pos[:, :l1],
             jnp.full((self.h, l2), self.zero_value, dtype=dtype)], axis=-1)
        neg = jnp.concatenate(
            [jnp.full((self.h, l2), self.zero_value, dtype=dtype),
             self.neg[:, self.neg.shape[1] - l1:]], axis=-1)

        if self.use_decay:
            coef = jnp.arange(1, n, dtype=dtype).reshape(1, -1)
            if self.use_exp:
                gamma = jnp.log(jax.nn.sigmoid(self.gamma)) * coef
                pos = gamma + pos
                neg = jnp.flip(gamma, axis=1) + neg
            else:
                gamma = jax.nn.sigmoid(self.gamma) ** coef
                pos = gamma * pos
                neg = jnp.flip(gamma, axis=1) * neg

        a = jnp.concatenate([self.zero, pos, self.zero, neg], axis=-1)  # (h, 2n)
        if self.use_exp:
            a = jnp.exp(jnp.clip(a, -60.0, 30.0))
        return a.astype(dtype)

    # --- circular conv of length 2n == per-head Toeplitz matrix --------------
    def _build_toeplitz(self, a, n):
        i = jnp.arange(n)[:, None]
        j = jnp.arange(n)[None, :]
        idx = jnp.mod(i - j, 2 * n)                    # (n, n)
        # Cast BEFORE the gather so T is materialized directly in bf16.
        return a.astype(self.compute_dtype)[:, idx]    # (h, n, n)

    # --- row sums of T in O(h*n) from `a` (== compute(ones, a)) --------------
    def _row_sums(self, a, n):
        c = jnp.cumsum(a.astype(jnp.float32), axis=-1)   # (h, 2n) inclusive
        total = c[:, -1:]
        # denorm[h,i] = sum_{m=0..i} a[m] + sum_{m=n+i+1..2n-1} a[m]
        return c[:, :n] + (total - c[:, n:2 * n])        # (h, n)

    def forward(self, x, dim=-2, normalize=False):
        assert dim in (-2, 2), "kernel implemented for dim=-2 (sequence axis)"
        assert x.ndim == 4
        n = x.shape[-2]
        a = self._build_a(n)                         # (h, 2n) f32
        T = self._build_toeplitz(a, n)               # (h, n, n) compute dtype
        inv = None
        if normalize:
            denorm = self._row_sums(a, n)            # (h, n) f32
            inv = (1.0 / denorm)[:, :, None]         # (h, n, 1)
        return toeplitz_apply(T, x, inv, compute_dtype=self.compute_dtype)


# --------------------------------- main ---------------------------------------

def _reference(module, x, normalize=False):
    """Dense f32 einsum reference of the same math."""
    n = x.shape[-2]
    a = module._build_a(n)
    i = jnp.arange(n)[:, None]
    j = jnp.arange(n)[None, :]
    T = a[:, jnp.mod(i - j, 2 * n)]                  # (h, n, n) f32
    out = jnp.einsum("hij,bhjd->bhid", T, x.astype(jnp.float32))
    if normalize:
        out = out / jnp.sum(T, axis=-1)[None, :, :, None]
    return out


def _max_rel_err(out, ref):
    return float(jnp.max(jnp.abs(out.astype(jnp.float32) - ref))
                 / jnp.max(jnp.abs(ref)))


if __name__ == "__main__":
    key = jax.random.PRNGKey(0)
    k1, k2, k3, kx1, kx2, kx3 = jax.random.split(key, 6)

    # ---- small demo shape (matches the module's intended usage) -------------
    h, n, B, D = 4, 16, 2, 32
    module = ToeplitzMultiheadPallas(h=h, n=n, causal=False, key=k1)
    x = jax.random.normal(kx1, (B, h, n, D), dtype=jnp.float32)

    out = jax.block_until_ready(
        jax.jit(lambda v: module.forward(v, dim=-2, normalize=False))(x))
    out_n = jax.block_until_ready(
        jax.jit(lambda v: module.forward(v, dim=-2, normalize=True))(x))
    assert out.shape == x.shape
    assert _max_rel_err(out, _reference(module, x, False)) < 3e-2   # bf16 MXU
    assert _max_rel_err(out_n, _reference(module, x, True)) < 3e-2

    # ---- larger shape: exercises K-axis accumulator + fused normalization ---
    h2, n2, B2, D2 = 2, 1024, 2, 128
    module2 = ToeplitzMultiheadPallas(h=h2, n=n2, causal=True, key=k2)
    x2 = jax.random.normal(kx2, (B2, h2, n2, D2), dtype=jnp.float32)
    out2 = jax.block_until_ready(
        jax.jit(lambda v: module2.forward(v, dim=-2, normalize=False))(x2))
    out2n = jax.block_until_ready(
        jax.jit(lambda v: module2.forward(v, dim=-2, normalize=True))(x2))
    assert _max_rel_err(out2, _reference(module2, x2, False)) < 3e-2
    assert _max_rel_err(out2n, _reference(module2, x2, True)) < 3e-2

    # ---- D>=256 path: batch stays a grid axis (no wrapper transpose) --------
    h3, n3, B3, D3 = 2, 256, 2, 256
    module3 = ToeplitzMultiheadPallas(h=h3, n=n3, causal=False, use_exp=True,
                                      use_decay=True, key=k3)
    x3 = jax.random.normal(kx3, (B3, h3, n3, D3), dtype=jnp.float32)
    out3 = jax.block_until_ready(
        jax.jit(lambda v: module3.forward(v, dim=-2, normalize=True))(x3))
    assert out3.shape == x3.shape
    assert _max_rel_err(out3, _reference(module3, x3, True)) < 3e-2

    print("KERNEL_OK")
</pallas_src>

<mosaic_0001>
module attributes {stable_mosaic.version = 11 : i64} {
  func.func @kernel(%arg0: i32, %arg1: i32, %arg2: i32, %arg3: i32, %arg4: memref<1x16x16xbf16, #tpu.memory_space<vmem>>, %arg5: memref<1x16x64xbf16, #tpu.memory_space<vmem>>, %arg6: memref<1x16x64xf32, #tpu.memory_space<vmem>>) attributes {dimension_semantics = [#tpu.dimension_semantics<parallel>, #tpu.dimension_semantics<parallel>, #tpu.dimension_semantics<parallel>, #tpu.dimension_semantics<arbitrary>], iteration_bounds = array<i64: 4, 1, 1, 1>, scalar_prefetch = 0 : i64, scratch_operands = 0 : i64, tpu.core_type = #tpu.core_type<tc>, window_params = [{transform_indices = @transform_0, window_bounds = array<i64: 1, 16, 16>}, {transform_indices = @transform_1, window_bounds = array<i64: 1, 16, 64>}, {transform_indices = @transform_2, window_bounds = array<i64: 1, 16, 64>}]} {
    %c0 = arith.constant 0 : index
    %c0_0 = arith.constant 0 : index
    %c0_1 = arith.constant 0 : index
    %0 = vector.load %arg4[%c0, %c0_0, %c0_1] : memref<1x16x16xbf16, #tpu.memory_space<vmem>>, vector<1x16x16xbf16>
    %1 = vector.shape_cast %0 : vector<1x16x16xbf16> to vector<16x16xbf16>
    %c0_2 = arith.constant 0 : index
    %c0_3 = arith.constant 0 : index
    %c0_4 = arith.constant 0 : index
    %2 = vector.load %arg5[%c0_2, %c0_3, %c0_4] : memref<1x16x64xbf16, #tpu.memory_space<vmem>>, vector<1x16x64xbf16>
    %3 = vector.shape_cast %2 : vector<1x16x64xbf16> to vector<16x64xbf16>
    %cst = arith.constant dense<0.000000e+00> : vector<16x64xf32>
    %4 = tpu.matmul %1, %3, %cst {dimension_numbers = #tpu.dot_dimension_numbers<[1], [0], [0], [1], [0, 0, 1, 1], [], []>} : vector<16x16xbf16>, vector<16x64xbf16>, vector<16x64xf32> -> vector<16x64xf32>
    %c0_5 = arith.constant 0 : index
    %c0_6 = arith.constant 0 : index
    %c0_7 = arith.constant 0 : index
    %5 = vector.load %arg6[%c0_5, %c0_6, %c0_7] : memref<1x16x64xf32, #tpu.memory_space<vmem>>, vector<1x16x64xf32>
    %6 = vector.shape_cast %5 : vector<1x16x64xf32> to vector<16x64xf32>
    %7 = vector.shape_cast %4 : vector<16x64xf32> to vector<1x16x64xf32>
    tpu.vector_store %arg6[%c0_5, %c0_6, %c0_7], %7 {strides = array<i32>} : memref<1x16x64xf32, #tpu.memory_space<vmem>>, vector<1x16x64xf32>,
    return
  }
  func.func @transform_0(%arg0: i32, %arg1: i32, %arg2: i32, %arg3: i32) -> (i32, i32, i32) {
    %c0_i32 = arith.constant 0 : i32
    return %arg0, %arg1, %arg3 : i32, i32, i32
  }
  func.func @transform_1(%arg0: i32, %arg1: i32, %arg2: i32, %arg3: i32) -> (i32, i32, i32) {
    %c0_i32 = arith.constant 0 : i32
    return %arg0, %arg3, %arg2 : i32, i32, i32
  }
  func.func @transform_2(%arg0: i32, %arg1: i32, %arg2: i32, %arg3: i32) -> (i32, i32, i32) {
    %c0_i32 = arith.constant 0 : i32
    return %arg0, %arg1, %arg2 : i32, i32, i32
  }
}

</mosaic_0001>

<llo_original>
// kernel: _lambda_.1
$region0: #{_lambda_.1}
  #allocation0 [shape = 'u32[]', space=smem, size = 0x4, offset = 0x4, fixed_abs, tag = 'smem constant byte address 0x4 - core index']
  #allocation1 [shape = 'u32[144,128]{1,0:T(1,128)}', space=vmem, size = 0x12000, scoped, tag = 'internal scratch']
  %s0 = inlined_call_operand.vmem [shape: bf16[4,16,16], index: 0, kind: input, shape index: {}]
  %s1 = inlined_call_operand.vmem [shape: bf16[4,16,64], index: 1, kind: input, shape index: {}]
  %s2 = inlined_call_operand.vmem [shape: f32[4,16,64], index: 2, kind: output, shape index: {}]
  %s3 = sld [smem:[#allocation0]]
  $region41: #{_lambda_.1} parent=0
    _
  %s5 = ssub.s32 1, %s3
  %s6 = scalar_select 0, %s5, %s3
  loop: start=0, step=1, limit=6
  $region2: #{_lambda_.1} parent=0 // loop_pre_header
    _
  $region3: #{_lambda_.1} parent=0 // loop_header
    %s8 = sphi 0, %s12
    %p9 = scmp.ge.s32.totalorder %s8, 6
    %s15 = sphi 0, %s41
    %s16 = sphi 0, %s37
    %s17 = sphi 0, %s33
    %s18 = sphi 0, %s29
    %s19 = sphi 0, %s15
    %s20 = sphi 0, %s16
    %s21 = sphi 0, %s17
    %s22 = sphi 0, %s18
    %s23 = sphi 0, %s19
    %s24 = sphi 0, %s20
    %s25 = sphi 0, %s21
    %s26 = sphi 0, %s22
    %s48 = sphi 0, %s50
    %s51 = sphi 0, %s48
    %s52 = sphi 0, %s51
    %s68 = sphi 0, %s52
    %s78 = sphi 0, %s80
    %s81 = sphi 0, %s78
    %s82 = sphi 0, %s81
    %s98 = sphi 0, %s82
    %s108 = sphi 0, %s110
    %s111 = sphi 0, %s108
    %s112 = sphi 0, %s111
    %s128 = sphi 0, %s112
  $region4: #{_lambda_.1} parent=0 // loop_header_branch
    %11 = sbr.rel (%p9) target = $region8
  $region5: #{_lambda_.1} parent=0 // loop_body
    %s13 = ssub.s32 %s8, 1
    %s14 = ssub.s32 %s8, 2
    %s27 = sadd.s32 1, %s18
    %p28 = scmp.ge.s32.totalorder %s27, 1
    %s29 = scalar_select %p28, 0, %s27
    %s30 = sadd.s32 1, %s17
    %s31 = scalar_select %p28, %s30, %s17
    %p32 = scmp.ge.s32.totalorder %s31, 1
    %s33 = scalar_select %p32, 0, %s31
    %s34 = sadd.s32 1, %s16
    %s35 = scalar_select %p32, %s34, %s16
    %p36 = scmp.ge.s32.totalorder %s35, 1
    %s37 = scalar_select %p36, 0, %s35
    %s38 = sadd.s32 1, %s15
    %s39 = scalar_select %p36, %s38, %s15
    %p40 = scmp.ge.s32.totalorder %s39, 4
    %s41 = scalar_select %p40, 0, %s39
    %s42 = ssub.s32 %s15, %s41
    %s43 = ssub.s32 %s16, %s37
    %s44 = sor.u32 %s42, %s43
    %s45 = ssub.s32 %s18, %s29
    %s46 = sor.u32 %s44, %s45
    %p47 = scmp.eq.s32.totalorder %s46, 0
    %s49 = sadd.s32 %s48, 1
    %s50 = scalar_select %p47, %s48, %s49
    %p53 = pneg %p47
    %p54 = scmp.eq.s32.totalorder %s8, 3
    %p55 = por %p53, %p54
    %p56 = scmp.ne.s32.totalorder %s48, %s51
    %p57 = scmp.eq.s32.totalorder %s8, 0
    %p58 = por %p56, %p57
    %p59 = scmp.ne.s32.totalorder %s48, %s51
    %p60 = scmp.eq.s32.totalorder %s13, 3
    %p61 = por %p59, %p60
    %p62 = scmp.ne.s32.totalorder %s51, %s52
    %p63 = scmp.eq.s32.totalorder %s13, 0
    %p64 = por %p62, %p63
    %p65 = scmp.ne.s32.totalorder %s51, %s52
    %p66 = scmp.eq.s32.totalorder %s14, 3
    %p67 = por %p65, %p66
    %p69 = scmp.ne.s32.totalorder %s52, %s68
    %p70 = scmp.eq.s32.totalorder %s14, 0
    %p71 = por %p69, %p70
    %s72 = ssub.s32 %s15, %s41
    %s73 = ssub.s32 %s18, %s29
    %s74 = sor.u32 %s72, %s73
    %s75 = ssub.s32 %s17, %s33
    %s76 = sor.u32 %s74, %s75
    %p77 = scmp.eq.s32.totalorder %s76, 0
    %s79 = sadd.s32 %s78, 1
    %s80 = scalar_select %p77, %s78, %s79
    %p83 = pneg %p77
    %p84 = scmp.eq.s32.totalorder %s8, 3
    %p85 = por %p83, %p84
    %p86 = scmp.ne.s32.totalorder %s78, %s81
    %p87 = scmp.eq.s32.totalorder %s8, 0
    %p88 = por %p86, %p87
    %p89 = scmp.ne.s32.totalorder %s78, %s81
    %p90 = scmp.eq.s32.totalorder %s13, 3
    %p91 = por %p89, %p90
    %p92 = scmp.ne.s32.totalorder %s81, %s82
    %p93 = scmp.eq.s32.totalorder %s13, 0
    %p94 = por %p92, %p93
    %p95 = scmp.ne.s32.totalorder %s81, %s82
    %p96 = scmp.eq.s32.totalorder %s14, 3
    %p97 = por %p95, %p96
    %p99 = scmp.ne.s32.totalorder %s82, %s98
    %p100 = scmp.eq.s32.totalorder %s14, 0
    %p101 = por %p99, %p100
    %s102 = ssub.s32 %s15, %s41
    %s103 = ssub.s32 %s16, %s37
    %s104 = sor.u32 %s102, %s103
    %s105 = ssub.s32 %s17, %s33
    %s106 = sor.u32 %s104, %s105
    %p107 = scmp.eq.s32.totalorder %s106, 0
    %s109 = sadd.s32 %s108, 1
    %s110 = scalar_select %p107, %s108, %s109
    %p113 = pneg %p107
    %p114 = scmp.eq.s32.totalorder %s8, 3
    %p115 = por %p113, %p114
    %p116 = scmp.ne.s32.totalorder %s108, %s111
    %p117 = scmp.eq.s32.totalorder %s8, 0
    %p118 = por %p116, %p117
    %p119 = scmp.ne.s32.totalorder %s108, %s111
    %p120 = scmp.eq.s32.totalorder %s13, 3
    %p121 = por %p119, %p120
    %p122 = scmp.ne.s32.totalorder %s111, %s112
    %p123 = scmp.eq.s32.totalorder %s13, 0
    %p124 = por %p122, %p123
    %p125 = scmp.ne.s32.totalorder %s111, %s112
    %p126 = scmp.eq.s32.totalorder %s14, 3
    %p127 = por %p125, %p126
    %p129 = scmp.ne.s32.totalorder %s112, %s128
    %p130 = scmp.eq.s32.totalorder %s14, 0
    %p131 = por %p129, %p130
    %p132 = scmp.le.s32.totalorder 1, %s8
    %p133 = scmp.lt.s32.totalorder %s8, 5
    %p134 = pnand %p132, %p133
    %p135 = pneg %p134
    // Predicated region
    $region9: #{_lambda_.1} parent=5 // pred_check
      _
    $region10: #{_lambda_.1} parent=5 // pred_check_branch
      %137 = sbr.rel (%p134) target = $region12
    $region11: #{_lambda_.1} parent=5 // pred_region
      %s138 = ssub.s32 %s8, 1
    $region12: #{_lambda_.1} parent=5 // pred_fallthru
      _
    %p139 = scmp.lt.s32.totalorder %s8, 4
    // Predicated region
    $region13: #{_lambda_.1} parent=5 // pred_check
      %p140 = pneg %p139
    $region14: #{_lambda_.1} parent=5 // pred_check_branch
      %142 = sbr.rel (%p140) target = $region16
    $region15: #{_lambda_.1} parent=5 // pred_region
      // Predicated region
      $region17: #{_lambda_.1} parent=15 // pred_check
        %p143 = pneg %p58
      $region18: #{_lambda_.1} parent=15 // pred_check_branch
        %145 = sbr.rel (%p143) target = $region20
      $region19: #{_lambda_.1} parent=15 // pred_region
        %s146 = smul.u32 2, %s16
        %p147 = scmp.lt.s32.totalorder %s15, 3
        %s148 = scalar_select %p147, %s15, 3
        %p149 = scmp.lt.s32.totalorder %s146, 1
        %s150 = scalar_select %p149, %s146, 1
        %p151 = scmp.lt.s32.totalorder %s18, 0
        %s152 = scalar_select %p151, %s18, 0
        %s153 = sadd.s32 %s152, %s150
        %s154 = smul.addr %s148, 2
        %s155 = sadd.s32 %s153, %s154
        %s156 = smul.addr %s155, 4
        %s157 = scalar_lea.vmem %s0, %s156
        %s158 = smul.u32 2, %s16
      $region20: #{_lambda_.1} parent=15 // pred_fallthru
        _
      // Predicated region
      $region21: #{_lambda_.1} parent=15 // pred_check
        %p159 = pneg %p88
      $region22: #{_lambda_.1} parent=15 // pred_check_branch
        %161 = sbr.rel (%p159) target = $region24
      $region23: #{_lambda_.1} parent=15 // pred_region
        %s162 = smul.u32 2, %s18
        %p163 = scmp.lt.s32.totalorder %s15, 3
        %s164 = scalar_select %p163, %s15, 3
        %p165 = scmp.lt.s32.totalorder %s162, 1
        %s166 = scalar_select %p165, %s162, 1
        %p167 = scmp.lt.s32.totalorder %s17, 0
        %s168 = scalar_select %p167, %s17, 0
        %s169 = sadd.s32 %s168, %s166
        %s170 = smul.addr %s164, 2
        %s171 = sadd.s32 %s169, %s170
        %s172 = smul.addr %s171, 4
        %s173 = scalar_lea.vmem %s1, %s172
        %s174 = smul.u32 2, %s18
      $region24: #{_lambda_.1} parent=15 // pred_fallthru
        _
    $region16: #{_lambda_.1} parent=5 // pred_fallthru
      _
    %p175 = scmp.le.s32.totalorder 1, %s8
    %p176 = scmp.lt.s32.totalorder %s8, 5
    %p177 = pnand %p175, %p176
    %p178 = pneg %p177
    // Predicated region
    $region25: #{_lambda_.1} parent=5 // pred_check
      _
    $region26: #{_lambda_.1} parent=5 // pred_check_branch
      %180 = sbr.rel (%p177) target = $region28
    $region27: #{_lambda_.1} parent=5 // pred_region
      %s181 = ssub.s32 %s8, 1
      %s182 = smul.u32 2, %s20
      %p183 = scmp.lt.s32.totalorder %s19, 3
      %s184 = scalar_select %p183, %s19, 3
      %p185 = scmp.lt.s32.totalorder %s182, 1
      %s186 = scalar_select %p185, %s182, 1
      %p187 = scmp.lt.s32.totalorder %s22, 0
      %s188 = scalar_select %p187, %s22, 0
      %s189 = sadd.s32 %s188, %s186
      %s190 = smul.addr %s184, 2
      %s191 = sadd.s32 %s189, %s190
      %s192 = smul.addr %s191, 4
      %s193 = scalar_lea.vmem %s0, %s192
      %p194 = pneg %p64
      %p195 = pneg %p61
      %s196 = smul.u32 2, %s22
      %p197 = scmp.lt.s32.totalorder %s19, 3
      %s198 = scalar_select %p197, %s19, 3
      %p199 = scmp.lt.s32.totalorder %s196, 1
      %s200 = scalar_select %p199, %s196, 1
      %p201 = scmp.lt.s32.totalorder %s21, 0
      %s202 = scalar_select %p201, %s21, 0
      %s203 = sadd.s32 %s202, %s200
      %s204 = smul.addr %s198, 2
      %s205 = sadd.s32 %s203, %s204
      %s206 = smul.addr %s205, 4
      %s207 = scalar_lea.vmem %s1, %s206
      %p208 = pneg %p94
      %p209 = pneg %p91
      %p210 = pneg %p124
      %p211 = pneg %p121
      %s212 = smul.u32 2, %s20
      %p213 = scmp.lt.s32.totalorder %s19, 3
      %s214 = scalar_select %p213, %s19, 3
      %p215 = scmp.lt.s32.totalorder %s212, 1
      %s216 = scalar_select %p215, %s212, 1
      %p217 = scmp.lt.s32.totalorder %s21, 0
      %s218 = scalar_select %p217, %s21, 0
      %s219 = sadd.s32 %s218, %s216
      %s220 = smul.addr %s214, 2
      %s221 = sadd.s32 %s219, %s220
      %s222 = smul.addr %s221, 8
      %s223 = scalar_lea.vmem %s2, %s222
      %s224 = smul.u32 2, %s20
      %p225 = scmp.lt.s32.totalorder %s19, 3
      %s226 = scalar_select %p225, %s19, 3
      %p227 = scmp.lt.s32.totalorder %s224, 1
      %s228 = scalar_select %p227, %s224, 1
      %p229 = scmp.lt.s32.totalorder %s22, 0
      %s230 = scalar_select %p229, %s22, 0
      %s231 = sadd.s32 %s230, %s228
      %s232 = smul.addr %s226, 2
      %s233 = sadd.s32 %s231, %s232
      %s234 = smul.addr %s233, 4
      %s235 = scalar_lea.vmem %s0, %s234
      %s236 = smul.u32 2, %s20
      %s237 = smul.u32 2, %s22
      %p238 = scmp.lt.s32.totalorder %s19, 3
      %s239 = scalar_select %p238, %s19, 3
      %p240 = scmp.lt.s32.totalorder %s237, 1
      %s241 = scalar_select %p240, %s237, 1
      %p242 = scmp.lt.s32.totalorder %s21, 0
      %s243 = scalar_select %p242, %s21, 0
      %s244 = sadd.s32 %s243, %s241
      %s245 = smul.addr %s239, 2
      %s246 = sadd.s32 %s244, %s245
      %s247 = smul.addr %s246, 4
      %s248 = scalar_lea.vmem %s1, %s247
      %s249 = smul.u32 2, %s22
      %s250 = smul.u32 2, %s20
      %p251 = scmp.lt.s32.totalorder %s19, 3
      %s252 = scalar_select %p251, %s19, 3
      %p253 = scmp.lt.s32.totalorder %s250, 1
      %s254 = scalar_select %p253, %s250, 1
      %p255 = scmp.lt.s32.totalorder %s21, 0
      %s256 = scalar_select %p255, %s21, 0
      %s257 = sadd.s32 %s256, %s254
      %s258 = smul.addr %s252, 2
      %s259 = sadd.s32 %s257, %s258
      %s260 = smul.addr %s259, 8
      %s261 = scalar_lea.vmem %s2, %s260
      %s262 = smul.u32 2, %s20
      %v264 = vld [vmem:[%s235] sm:$0xf]
      %v265 = vld [vmem:[%s235 + $0x4] sm:$0xf]
      %v266 = vld [vmem:[%s248] sm:$0xf]
      %v267 = vld [vmem:[%s248 + $0x4] sm:$0xf]
      %v270 = vunpack.c.l.b16 %v264
      %v271 = vunpack.c.l.b16 %v265
      %v272 = vpack.c.b16 %v271, %v270
      %v275 = vunpack.c.l.b16 %v266
      %v276 = vunpack.c.l.b16 %v267
      %v277 = vpack.c.b16 %v276, %v275
      %vm279 = vcmask 130048
      %v281 = vsel %vm279, %v272, 0
      %283 = vmatprep.subr.bf16.mxu0 0
      %284 = vmatpush1.bf16.msra.mxu0 %v277
      %285 = vmatprep.subr.bf16.mxu0 0
      %286 = vmatpush1.bf16.msra.mxu0 0
      %287 = vmatprep.subr.bf16.mxu0 0
      %288 = vmatpush1.bf16.msra.mxu0 0
      %289 = vmatprep.subr.bf16.mxu0 0
      %290 = vmatpush1.bf16.msra.mxu0 0
      %291 = vmatprep.subr.bf16.mxu0 0
      %292 = vmatpush1.bf16.msra.mxu0 0
      %293 = vmatprep.subr.bf16.mxu0 0
      %294 = vmatpush1.bf16.msra.mxu0 0
      %295 = vmatprep.subr.bf16.mxu0 0
      %296 = vmatpush1.bf16.msra.mxu0 0
      %297 = vmatprep.subr.bf16.mxu0 0
      %298 = vmatpush1.bf16.msra.mxu0 0
      %299 = vmatprep.subr.bf16.mxu0 0
      %300 = vmatpush1.bf16.msra.mxu0 0
      %301 = vmatprep.subr.bf16.mxu0 0
      %302 = vmatpush1.bf16.msra.mxu0 0
      %303 = vmatprep.subr.bf16.mxu0 0
      %304 = vmatpush1.bf16.msra.mxu0 0
      %305 = vmatprep.subr.bf16.mxu0 0
      %306 = vmatpush1.bf16.msra.mxu0 0
      %307 = vmatprep.subr.bf16.mxu0 0
      %308 = vmatpush1.bf16.msra.mxu0 0
      %309 = vmatprep.subr.bf16.mxu0 0
      %310 = vmatpush1.bf16.msra.mxu0 0
      %311 = vmatprep.subr.bf16.mxu0 0
      %312 = vmatpush1.bf16.msra.mxu0 0
      %313 = vmatprep.subr.bf16.mxu0 0
      %314 = vmatpush1.bf16.msra.mxu0 0
      %315 = vmatprep.mubr.bf16.mxu0 0
      %316 = vmatmul.mubr.bf16.gmra.mrb[0].mxu0 %v281
      %v317 = vpop.f32.mrb[0].mxu0
      %v318 = vadd.f32 0.0, %v317
      %v319 = vpop.f32.mrb[0].mxu0
      %v320 = vpop.f32.mrb[0].mxu0
      %v321 = vadd.f32 0.0, %v320
      %v322 = vpop.f32.mrb[0].mxu0
      %323 = vdwg.mxu0
      %vm324 = vcmask 523264
      %325 = vst.msk [vmem:[%s261] sm:$0xff] %vm324, %v318
      %326 = vst.msk [vmem:[%s261 + $0x8] sm:$0xff] %vm324, %v321
      %s327 = smul.u32 2, %s20
      %p328 = scmp.lt.s32.totalorder %s19, 3
      %s329 = scalar_select %p328, %s19, 3
      %p330 = scmp.lt.s32.totalorder %s327, 1
      %s331 = scalar_select %p330, %s327, 1
      %p332 = scmp.lt.s32.totalorder %s21, 0
      %s333 = scalar_select %p332, %s21, 0
      %s334 = sadd.s32 %s333, %s331
      %s335 = smul.addr %s329, 2
      %s336 = sadd.s32 %s334, %s335
      %s337 = smul.addr %s336, 8
      %s338 = scalar_lea.vmem %s2, %s337
      // Predicated region
      $region29: #{_lambda_.1} parent=27 // pred_check
        %p339 = pneg %p121
      $region30: #{_lambda_.1} parent=27 // pred_check_branch
        %341 = sbr.rel (%p339) target = $region32
      $region31: #{_lambda_.1} parent=27 // pred_region
        %s342 = smul.u32 2, %s20
      $region32: #{_lambda_.1} parent=27 // pred_fallthru
        _
    $region28: #{_lambda_.1} parent=5 // pred_fallthru
      _
    %p343 = scmp.le.s32.totalorder 2, %s8
    // Predicated region
    $region33: #{_lambda_.1} parent=5 // pred_check
      %p344 = pneg %p343
    $region34: #{_lambda_.1} parent=5 // pred_check_branch
      %346 = sbr.rel (%p344) target = $region36
    $region35: #{_lambda_.1} parent=5 // pred_region
      %s347 = ssub.s32 %s8, 2
      // Predicated region
      $region37: #{_lambda_.1} parent=35 // pred_check
        %p348 = pneg %p127
      $region38: #{_lambda_.1} parent=35 // pred_check_branch
        %350 = sbr.rel (%p348) target = $region40
      $region39: #{_lambda_.1} parent=35 // pred_region
        %s351 = smul.u32 2, %s24
        %p352 = scmp.lt.s32.totalorder %s23, 3
        %s353 = scalar_select %p352, %s23, 3
        %p354 = scmp.lt.s32.totalorder %s351, 1
        %s355 = scalar_select %p354, %s351, 1
        %p356 = scmp.lt.s32.totalorder %s25, 0
        %s357 = scalar_select %p356, %s25, 0
        %s358 = sadd.s32 %s357, %s355
        %s359 = smul.addr %s353, 2
        %s360 = sadd.s32 %s358, %s359
        %s361 = smul.addr %s360, 8
        %s362 = scalar_lea.vmem %s2, %s361
      $region40: #{_lambda_.1} parent=35 // pred_fallthru
        _
    $region36: #{_lambda_.1} parent=5 // pred_fallthru
      _
  $region6: #{_lambda_.1} parent=0 // loop_footer
    %s12 = sadd.s32 1, %s8
  $region7: #{_lambda_.1} parent=0 // loop_footer_branch
    %7 = sbr.rel target = $region3
  $region8: #{_lambda_.1} parent=0 // loop_exit
    _

</llo_original>
